<compile_context>
chip_gen: v6e
topology: v6e:2x2x1
jax: 0.10.0
libtpu: 0.0.40
codegen_flags: <defaults>
</compile_context>

<pallas_src>
import math
import functools

import jax
import jax.numpy as jnp
from jax.experimental import pallas as pl
from jax.experimental.pallas import tpu as pltpu

_LANES = 128  # lane width of one vreg tile


def _pick_tile(n, pref):
    """Largest tile <= pref that divides n."""
    t = max(1, min(pref, n))
    while n % t:
        t -= 1
    return t


# ---------------------------------------------------------------------------
# Linear kernel: y = x @ W + b  (one wide MXU matmul per row tile).
# Used for the hoisted Q/K/V projections and for the output projection.
# ---------------------------------------------------------------------------
def _linear_kernel(x_ref, w_ref, b_ref, o_ref, *, compute_dtype):
    x = x_ref[...].astype(compute_dtype)                            # [tm, d_in]
    y = jnp.dot(x, w_ref[...], preferred_element_type=jnp.float32) + b_ref[...]
    o_ref[...] = y.astype(o_ref.dtype)


def _linear(x2d, w, b, *, out_dtype, compute_dtype, row_tile=256):
    """x2d: [M, d_in];  w: [d_in, d_out] (pre-cast to compute_dtype);  b: [1, d_out] f32."""
    M, d_in = x2d.shape
    d_out = w.shape[1]
    tm = _pick_tile(M, row_tile)
    cost = pl.CostEstimate(
        flops=int(2 * M * d_in * d_out),
        transcendentals=0,
        bytes_accessed=int(M * d_in * x2d.dtype.itemsize
                           + d_in * d_out * jnp.dtype(compute_dtype).itemsize
                           + M * d_out * jnp.dtype(out_dtype).itemsize))
    return pl.pallas_call(
        functools.partial(_linear_kernel, compute_dtype=compute_dtype),
        out_shape=jax.ShapeDtypeStruct((M, d_out), out_dtype),
        grid_spec=pltpu.PrefetchScalarGridSpec(
            num_scalar_prefetch=0,
            grid=(M // tm,),
            in_specs=[pl.BlockSpec((tm, d_in), lambda i: (i, 0)),
                      pl.BlockSpec((d_in, d_out), lambda i: (0, 0)),
                      pl.BlockSpec((1, d_out), lambda i: (0, 0))],
            out_specs=pl.BlockSpec((tm, d_out), lambda i: (i, 0)),
        ),
        compiler_params=pltpu.CompilerParams(
            dimension_semantics=("parallel",),
            vmem_limit_bytes=48 * 1024 * 1024),
        cost_estimate=cost,
    )(x2d, w, b)


# ---------------------------------------------------------------------------
# Flash-attention kernel over already-projected bf16 Q/K/V.
# grid = (batch, q_tile, kv_tile); kv_tile is the online-softmax reduction axis.
# ---------------------------------------------------------------------------
def _flash_kernel(*refs, n_heads, d_feature, mask_kind, compute_dtype, tq, tk):
    qp_ref, kp_ref, vp_ref = refs[0:3]
    if mask_kind == "explicit":
        mask_ref = refs[3]
        out_ref, acc_ref, m_ref, l_ref = refs[4:]
    else:
        mask_ref = None
        out_ref, acc_ref, m_ref, l_ref = refs[3:]

    f32 = jnp.float32
    df = d_feature
    qi = pl.program_id(1)
    ki = pl.program_id(2)

    # First kv tile of this (batch, q-tile): reset the online-softmax state.
    @pl.when(ki == 0)
    def _init():
        m_ref[...] = jnp.full_like(m_ref, -jnp.inf)
        l_ref[...] = jnp.zeros_like(l_ref)
        acc_ref[...] = jnp.zeros_like(acc_ref)

    def _tile_update():
        if mask_kind == "explicit":
            mbias = mask_ref[0].astype(f32)                 # [tq, tk] additive 0/-1e9
        elif mask_kind == "causal":
            row = qi * tq + jax.lax.broadcasted_iota(jnp.int32, (tq, tk), 0)
            col = ki * tk + jax.lax.broadcasted_iota(jnp.int32, (tq, tk), 1)
            keep = row >= col

        # Per-head flash update.  Per-head slices are re-loaded from VMEM refs
        # inside the loop (bounds live ranges; no full-width value stays live).
        # All softmax / elementwise math is f32 (works on v5e too).
        dims = (((1,), (1,)), ((), ()))                     # qh @ kh^T
        for h in range(n_heads):
            lo = h * df
            qh = qp_ref[0, :, lo:lo + df]                   # [tq, df] bf16
            kh = kp_ref[0, :, lo:lo + df]                   # [tk, df] bf16
            s = jax.lax.dot_general(qh, kh, dims,
                                    preferred_element_type=f32)      # [tq, tk]
            if mask_kind == "explicit":
                s = s + mbias
            elif mask_kind == "causal":
                s = jnp.where(keep, s, -1.0e9)

            m_prev = m_ref[h, :, 0:1]                       # [tq, 1]
            m_new = jnp.maximum(m_prev, jnp.max(s, axis=-1, keepdims=True))
            alpha = jnp.exp(m_prev - m_new)                 # [tq, 1]
            p = jnp.exp(s - m_new)                          # [tq, tk] f32
            l_new = alpha * l_ref[h, :, 0:1] + jnp.sum(p, axis=-1, keepdims=True)

            vh = vp_ref[0, :, lo:lo + df]                   # [tk, df] bf16
            acc_ref[h] = alpha * acc_ref[h] + jnp.dot(
                p.astype(compute_dtype), vh, preferred_element_type=f32)
            # Lane-broadcast full stores (no 1-lane masked vst).
            m_ref[h] = jnp.broadcast_to(m_new, (tq, _LANES))
            l_ref[h] = jnp.broadcast_to(l_new, (tq, _LANES))

    if mask_kind == "causal":
        # Skip kv tiles that lie entirely above the causal diagonal for this q tile.
        pl.when(ki * tk <= qi * tq + (tq - 1))(_tile_update)
    else:
        _tile_update()

    # Last kv tile: normalize and write the head-concatenated context tile.
    @pl.when(ki == pl.num_programs(2) - 1)
    def _finalize():
        for h in range(n_heads):
            lo = h * df
            inv_l = pl.reciprocal(l_ref[h, :, 0:1], approx=True)      # [tq, 1]
            out_ref[0, :, lo:lo + df] = (acc_ref[h] * inv_l).astype(out_ref.dtype)


# ---------------------------------------------------------------------------
# Public wrapper
# ---------------------------------------------------------------------------
def multi_head_attention(queries, keys, values, params, mask=None, *,
                         n_heads, d_feature, causal=False,
                         q_tile=256, kv_tile=256, row_tile=256,
                         compute_dtype=jnp.bfloat16):
    """queries/keys/values: [B, S, d_model] f32.
    mask: optional [.., S, S] bool/0-1 (True = attend), broadcastable to [B, S, S];
    or causal=True to generate the causal mask in-kernel (no O(S^2) HBM mask).
    Returns [B, S, d_model] in queries.dtype."""
    wq, wk, wv, bq, bk, bv, wp, bp = params
    B, S, d_model = queries.shape
    assert d_model == n_heads * d_feature
    assert not (causal and mask is not None), "pass either causal=True or mask, not both"

    cd = compute_dtype
    # Fold the 1/sqrt(d_feature) softmax scale into Wq/bq; pre-cast weights to bf16.
    scale = 1.0 / math.sqrt(d_feature)
    wq_c = (wq * scale).astype(cd)
    bq_c = (bq * scale).astype(jnp.float32)
    wk_c, wv_c, wp_c = (w.astype(cd) for w in (wk, wv, wp))
    bk_c, bv_c, bp_c = (b.astype(jnp.float32) for b in (bk, bv, bp))

    # ---- 1) Hoisted Q/K/V projections: each token projected exactly once. -------
    q2 = queries.reshape(B * S, d_model)
    k2 = keys.reshape(B * S, d_model)
    v2 = values.reshape(B * S, d_model)
    qp = _linear(q2, wq_c, bq_c, out_dtype=cd, compute_dtype=cd,
                 row_tile=row_tile).reshape(B, S, d_model)
    kp = _linear(k2, wk_c, bk_c, out_dtype=cd, compute_dtype=cd,
                 row_tile=row_tile).reshape(B, S, d_model)
    vp = _linear(v2, wv_c, bv_c, out_dtype=cd, compute_dtype=cd,
                 row_tile=row_tile).reshape(B, S, d_model)

    # ---- 2) Flash attention over bf16 projected activations (weight-free). ------
    tq = _pick_tile(S, q_tile)      # keep <= 256 on v7x (64 MiB VMEM)
    tk = _pick_tile(S, kv_tile)
    n_q, n_kv = S // tq, S // tk

    q_spec = pl.BlockSpec((1, tq, d_model), lambda b, i, j: (b, i, 0))
    kv_spec = pl.BlockSpec((1, tk, d_model), lambda b, i, j: (b, j, 0))
    inputs = [qp, kp, vp]
    in_specs = [q_spec, kv_spec, kv_spec]

    if causal:
        mask_kind = "causal"
    elif mask is not None:
        mask_kind = "explicit"
        keep = jnp.broadcast_to(jnp.asarray(mask), (B, S, S)).astype(bool)
        add_mask = jnp.where(keep, 0.0, -1.0e9).astype(jnp.bfloat16)
        inputs.append(add_mask)
        in_specs.append(pl.BlockSpec((1, tq, tk), lambda b, i, j: (b, i, j)))
    else:
        mask_kind = "none"

    scratch = [
        pltpu.VMEM((n_heads, tq, d_feature), jnp.float32),  # un-normalized ctx, head-major
        pltpu.VMEM((n_heads, tq, _LANES), jnp.float32),     # running max, lane-broadcast
        pltpu.VMEM((n_heads, tq, _LANES), jnp.float32),     # running denom, lane-broadcast
    ]

    kernel = functools.partial(_flash_kernel, n_heads=n_heads, d_feature=d_feature,
                               mask_kind=mask_kind, compute_dtype=cd, tq=tq, tk=tk)

    cost = pl.CostEstimate(
        flops=int(4 * B * S * S * d_model),
        transcendentals=int(B * n_heads * S * (S + n_kv + 1)),
        bytes_accessed=int(B * S * d_model * 2 * (2 + 2 * n_q)
                           + (B * S * S * 2 if mask_kind == "explicit" else 0)),
    )

    ctx = pl.pallas_call(
        kernel,
        out_shape=jax.ShapeDtypeStruct((B, S, d_model), cd),
        grid_spec=pltpu.PrefetchScalarGridSpec(
            num_scalar_prefetch=0,
            grid=(B, n_q, n_kv),       # B * n_q >= 2 keeps both v7x TCs busy
            in_specs=in_specs,
            out_specs=pl.BlockSpec((1, tq, d_model), lambda b, i, j: (b, i, 0)),
            scratch_shapes=scratch,
        ),
        compiler_params=pltpu.CompilerParams(
            dimension_semantics=("parallel", "parallel", "arbitrary"),
            vmem_limit_bytes=48 * 1024 * 1024),
        cost_estimate=cost,
    )(*inputs)

    # ---- 3) Output projection (heads already concatenated in ctx). --------------
    out = _linear(ctx.reshape(B * S, d_model), wp_c, bp_c,
                  out_dtype=queries.dtype, compute_dtype=cd, row_tile=row_tile)
    return out.reshape(B, S, d_model)


# ---------------------------------------------------------------------------
# Parameter init (nn.Linear-style, per-head q/k/v Linears fused / stacked) and
# a pure-JAX reference of the PyTorch forward (eval mode).
# ---------------------------------------------------------------------------
def init_params(key, d_model, d_feature, n_heads):
    ks = jax.random.split(key, 8)
    dh = n_heads * d_feature
    lim = 1.0 / math.sqrt(d_model)
    wq = jax.random.uniform(ks[0], (d_model, dh), jnp.float32, -lim, lim)
    wk = jax.random.uniform(ks[1], (d_model, dh), jnp.float32, -lim, lim)
    wv = jax.random.uniform(ks[2], (d_model, dh), jnp.float32, -lim, lim)
    bq = jax.random.uniform(ks[3], (1, dh), jnp.float32, -lim, lim)
    bk = jax.random.uniform(ks[4], (1, dh), jnp.float32, -lim, lim)
    bv = jax.random.uniform(ks[5], (1, dh), jnp.float32, -lim, lim)
    lim_p = 1.0 / math.sqrt(dh)
    wp = jax.random.uniform(ks[6], (dh, d_model), jnp.float32, -lim_p, lim_p)
    bp = jax.random.uniform(ks[7], (1, d_model), jnp.float32, -lim_p, lim_p)
    return (wq, wk, wv, bq, bk, bv, wp, bp)


def reference_mha(queries, keys, values, params, *, n_heads, d_feature,
                  mask=None, compute_dtype=jnp.float32):
    """Pure-JAX reference for the PyTorch forward (eval mode).  With
    compute_dtype=bfloat16 it mirrors the kernel's mixed-precision cast points."""
    wq, wk, wv, bq, bk, bv, wp, bp = params
    cd = compute_dtype
    B, S, d_model = queries.shape
    scale = 1.0 / math.sqrt(d_feature)

    def proj(x, w, b):
        y = jnp.einsum('bsd,df->bsf', x.astype(cd), w.astype(cd),
                       preferred_element_type=jnp.float32) + b
        return y.astype(cd)

    Q = proj(queries, wq * scale, bq * scale)
    K = proj(keys, wk, bk)
    V = proj(values, wv, bv)
    Qh = Q.reshape(B, S, n_heads, d_feature).transpose(0, 2, 1, 3)
    Kh = K.reshape(B, S, n_heads, d_feature).transpose(0, 2, 1, 3)
    Vh = V.reshape(B, S, n_heads, d_feature).transpose(0, 2, 1, 3)
    attn = jnp.einsum('bhqf,bhkf->bhqk', Qh, Kh, preferred_element_type=jnp.float32)
    if mask is not None:
        keep = jnp.broadcast_to(jnp.asarray(mask).astype(bool), (B, S, S))
        attn = jnp.where(keep[:, None], attn, -1.0e9)
    p = jax.nn.softmax(attn, axis=-1)            # dropout == identity in eval mode
    out_h = jnp.einsum('bhqk,bhkf->bhqf', p.astype(cd), Vh,
                       preferred_element_type=jnp.float32)
    x = out_h.transpose(0, 2, 1, 3).reshape(B, S, d_model).astype(cd)
    return jnp.einsum('bsf,fm->bsm', x, wp.astype(cd),
                      preferred_element_type=jnp.float32) + bp


if __name__ == "__main__":
    B, S = 2, 8
    n_heads, d_feature = 4, 8
    d_model = n_heads * d_feature            # 32

    key = jax.random.PRNGKey(0)
    kq, kk, kv_, kp_ = jax.random.split(key, 4)
    queries = jax.random.normal(kq, (B, S, d_model), jnp.float32)
    keys_ = jax.random.normal(kk, (B, S, d_model), jnp.float32)
    values = jax.random.normal(kv_, (B, S, d_model), jnp.float32)
    params = init_params(kp_, d_model, d_feature, n_heads)

    # 1) Unmasked path (mask branch compiled out entirely).
    out = multi_head_attention(queries, keys_, values, params,
                               n_heads=n_heads, d_feature=d_feature)
    out = jax.block_until_ready(out)
    assert out.shape == (B, S, d_model)
    ref_bf16 = reference_mha(queries, keys_, values, params, n_heads=n_heads,
                             d_feature=d_feature, compute_dtype=jnp.bfloat16)
    ref_f32 = reference_mha(queries, keys_, values, params, n_heads=n_heads,
                            d_feature=d_feature, compute_dtype=jnp.float32)
    assert jnp.allclose(out, ref_bf16, atol=3e-2, rtol=3e-2), "mismatch vs bf16 ref"
    assert jnp.allclose(out, ref_f32, atol=1e-1, rtol=1e-1), "mismatch vs f32 ref"

    causal_mask = jnp.tril(jnp.ones((S, S), dtype=bool))[None]
    ref_m = reference_mha(queries, keys_, values, params, n_heads=n_heads,
                          d_feature=d_feature, mask=causal_mask,
                          compute_dtype=jnp.bfloat16)

    # 2) Causal path: mask generated in-kernel, fully-masked kv tiles skipped.
    out_c = multi_head_attention(queries, keys_, values, params, causal=True,
                                 n_heads=n_heads, d_feature=d_feature)
    out_c = jax.block_until_ready(out_c)
    assert jnp.allclose(out_c, ref_m, atol=3e-2, rtol=3e-2), "causal mismatch"

    # 3) Same mask passed explicitly (arbitrary-mask HBM path).
    out_m = multi_head_attention(queries, keys_, values, params, mask=causal_mask,
                                 n_heads=n_heads, d_feature=d_feature)
    out_m = jax.block_until_ready(out_m)
    assert jnp.allclose(out_m, ref_m, atol=3e-2, rtol=3e-2), "masked mismatch"
    assert jnp.allclose(out_c, out_m, atol=3e-2, rtol=3e-2), "causal vs explicit mismatch"

    print("KERNEL_OK")
</pallas_src>

<mosaic_0001>
module attributes {stable_mosaic.version = 11 : i64} {
  func.func @_linear_kernel(%arg0: i32, %arg1: memref<16x32xf32, #tpu.memory_space<vmem>>, %arg2: memref<32x32xbf16, #tpu.memory_space<vmem>>, %arg3: memref<1x32xf32, #tpu.memory_space<vmem>>, %arg4: memref<16x32xbf16, #tpu.memory_space<vmem>>) attributes {dimension_semantics = [#tpu.dimension_semantics<parallel>], iteration_bounds = array<i64: 1>, scalar_prefetch = 0 : i64, scratch_operands = 0 : i64, tpu.core_type = #tpu.core_type<tc>, window_params = [{transform_indices = @transform_0, window_bounds = array<i64: 16, 32>}, {pipeline_mode = #tpu.pipeline_mode<synchronous>, transform_indices = @transform_1, window_bounds = array<i64: 32, 32>}, {pipeline_mode = #tpu.pipeline_mode<synchronous>, transform_indices = @transform_2, window_bounds = array<i64: 1, 32>}, {transform_indices = @transform_3, window_bounds = array<i64: 16, 32>}]} {
    %c0 = arith.constant 0 : index
    %c0_0 = arith.constant 0 : index
    %0 = vector.load %arg1[%c0, %c0_0] : memref<16x32xf32, #tpu.memory_space<vmem>>, vector<16x32xf32>
    %1 = arith.truncf %0 : vector<16x32xf32> to vector<16x32xbf16>
    %c0_1 = arith.constant 0 : index
    %c0_2 = arith.constant 0 : index
    %2 = vector.load %arg2[%c0_1, %c0_2] : memref<32x32xbf16, #tpu.memory_space<vmem>>, vector<32x32xbf16>
    %cst = arith.constant dense<0.000000e+00> : vector<16x32xf32>
    %3 = tpu.matmul %1, %2, %cst {dimension_numbers = #tpu.dot_dimension_numbers<[1], [0], [0], [1], [0, 0, 1, 1], [], []>} : vector<16x32xbf16>, vector<32x32xbf16>, vector<16x32xf32> -> vector<16x32xf32>
    %c0_3 = arith.constant 0 : index
    %c0_4 = arith.constant 0 : index
    %4 = vector.load %arg3[%c0_3, %c0_4] : memref<1x32xf32, #tpu.memory_space<vmem>>, vector<1x32xf32>
    %5 = vector.broadcast %4 : vector<1x32xf32> to vector<16x32xf32>
    %6 = arith.addf %3, %5 : vector<16x32xf32>
    %7 = arith.truncf %6 : vector<16x32xf32> to vector<16x32xbf16>
    %c0_5 = arith.constant 0 : index
    %c0_6 = arith.constant 0 : index
    %8 = vector.load %arg4[%c0_5, %c0_6] : memref<16x32xbf16, #tpu.memory_space<vmem>>, vector<16x32xbf16>
    tpu.vector_store %arg4[%c0_5, %c0_6], %7 {strides = array<i32>} : memref<16x32xbf16, #tpu.memory_space<vmem>>, vector<16x32xbf16>,
    return
  }
  func.func @transform_0(%arg0: i32) -> (i32, i32) {
    %c0_i32 = arith.constant 0 : i32
    %c0_i32_0 = arith.constant 0 : i32
    return %arg0, %c0_i32 : i32, i32
  }
  func.func @transform_1(%arg0: i32) -> (i32, i32) {
    %c0_i32 = arith.constant 0 : i32
    %c0_i32_0 = arith.constant 0 : i32
    %c0_i32_1 = arith.constant 0 : i32
    return %c0_i32, %c0_i32_0 : i32, i32
  }
  func.func @transform_2(%arg0: i32) -> (i32, i32) {
    %c0_i32 = arith.constant 0 : i32
    %c0_i32_0 = arith.constant 0 : i32
    %c0_i32_1 = arith.constant 0 : i32
    return %c0_i32, %c0_i32_0 : i32, i32
  }
  func.func @transform_3(%arg0: i32) -> (i32, i32) {
    %c0_i32 = arith.constant 0 : i32
    %c0_i32_0 = arith.constant 0 : i32
    return %arg0, %c0_i32 : i32, i32
  }
}

</mosaic_0001>

<llo_original>
// kernel: tpu_custom_call.1
$region0: #{tpu_custom_call.1}
  #allocation0 [shape = 'u32[]', space=smem, size = 0x4, offset = 0x4, fixed_abs, tag = 'smem constant byte address 0x4 - core index']
  #allocation1 [shape = 'u32[144,128]{1,0:T(1,128)}', space=vmem, size = 0x12000, scoped, tag = 'internal scratch']
  %s0 = inlined_call_operand.hbm [shape: f32[16,32], index: 0, kind: input, shape index: {}]
  %s1 = inlined_call_operand.hbm [shape: bf16[32,32], index: 1, kind: input, shape index: {}]
  %s2 = inlined_call_operand.vmem [shape: f32[1,32], index: 2, kind: input, shape index: {}]
  %s3 = inlined_call_operand.hbm [shape: bf16[16,32], index: 3, kind: output, shape index: {}]
  %s4 = sld [smem:[#allocation0]]
  $region30: #{tpu_custom_call.1} parent=0
    _
  %s6 = ssub.s32 1, %s4
  %s7 = scalar_select 0, %s6, %s4
  $region1: #{tpu_custom_call.1} parent=0
    #allocation2 [shape = 'u8[8192]{0}', space=vmem, size = 0x2000, scoped, tag = 'input window, operand 0, single buffered']
    #allocation3 [shape = 's32[1]{0}', space=sflag, size = 0x4, scoped, tag = 'scoped memory for tpu_custom_call.1']
    #allocation4 [shape = 's32[1]{0}', space=sflag, size = 0x4, scoped, tag = 'scoped memory for tpu_custom_call.1']
    #allocation5 [shape = 'u8[8192]{0}', space=vmem, size = 0x2000, scoped, tag = 'input window, operand 1, single buffered']
    #allocation6 [shape = 's32[1]{0}', space=sflag, size = 0x4, scoped, tag = 'scoped memory for tpu_custom_call.1']
    #allocation7 [shape = 'u8[4096]{0}', space=vmem, size = 0x1000, scoped, tag = 'output window, operand 0, single buffered']
    %8 = vsyncpa [#allocation3], 0
    %9 = vsyncpa [#allocation6], 0
    %10 = vsyncpa [#allocation4], 0
    // Predicated region
    $region2: #{tpu_custom_call.1} parent=1 // pred_check
      _
    $region3: #{tpu_custom_call.1} parent=1 // pred_check_branch
      %12 = sbr.rel (0) target = $region5
    $region4: #{tpu_custom_call.1} parent=1 // pred_region
      %s14 = ssub.s32 256, 256
      %15 = vsyncadd [#allocation3], %s14
      %s16 = sshll.u32 [#allocation2], 4
      %s17 = int_to_ptr.vmem [resolvable:$true] %s16
      %22 = dma.hbm_to_vmem [thread:$0]  %s0, 256, %s17, [#allocation3], 128, 128, 8
    $region5: #{tpu_custom_call.1} parent=1 // pred_fallthru
      _
    // Predicated region
    $region6: #{tpu_custom_call.1} parent=1 // pred_check
      _
    $region7: #{tpu_custom_call.1} parent=1 // pred_check_branch
      %24 = sbr.rel (0) target = $region9
    $region8: #{tpu_custom_call.1} parent=1 // pred_region
      %s26 = ssub.s32 256, 256
      %27 = vsyncadd [#allocation6], %s26
      %s28 = sshll.u32 [#allocation5], 4
      %s29 = int_to_ptr.vmem [resolvable:$true] %s28
      %34 = dma.hbm_to_vmem [thread:$0]  %s1, 256, %s29, [#allocation6], 64, 64, 4
    $region9: #{tpu_custom_call.1} parent=1 // pred_fallthru
      _
    // Predicated region
    $region10: #{tpu_custom_call.1} parent=1 // pred_check
      _
    $region11: #{tpu_custom_call.1} parent=1 // pred_check_branch
      %36 = sbr.rel (0) target = $region13
    $region12: #{tpu_custom_call.1} parent=1 // pred_region
      _
    $region13: #{tpu_custom_call.1} parent=1 // pred_fallthru
      _
    // Predicated region
    $region14: #{tpu_custom_call.1} parent=1 // pred_check
      _
    $region15: #{tpu_custom_call.1} parent=1 // pred_check_branch
      %38 = sbr.rel (0) target = $region17
    $region16: #{tpu_custom_call.1} parent=1 // pred_region
      %39 = dma.done [#allocation3], 256
    $region17: #{tpu_custom_call.1} parent=1 // pred_fallthru
      _
    // Predicated region
    $region18: #{tpu_custom_call.1} parent=1 // pred_check
      _
    $region19: #{tpu_custom_call.1} parent=1 // pred_check_branch
      %41 = sbr.rel (0) target = $region21
    $region20: #{tpu_custom_call.1} parent=1 // pred_region
      %42 = dma.done [#allocation6], 256
    $region21: #{tpu_custom_call.1} parent=1 // pred_fallthru
      _
    %v44 = vld [vmem:[#allocation2] sm:$0xff]
    %v45 = vld [vmem:[#allocation2 + $0x8] sm:$0xff]
    %v46 = vpack.c.bf16 %v45, %v44
    %v47 = vld [vmem:[#allocation5] sm:$0xf]
    %v48 = vld [vmem:[#allocation5 + $0x4] sm:$0xf]
    %v49 = vld [vmem:[#allocation5 + $0x8] sm:$0xf]
    %v50 = vld [vmem:[#allocation5 + $0xc] sm:$0xf]
    %v51 = vld [vmem:[%s2] sm:$0x1]
    %v53 = vlaneseq
    %v54 = vshrl.u32 %v53, 7
    %v55 = vsub.s32 0, %v54
    %v56 = vrot.slane %v51, %v55
    %v62 = vunpack.c.l.b16 %v47
    %v63 = vunpack.c.l.b16 %v48
    %v64 = vunpack.c.l.b16 %v49
    %v65 = vunpack.c.l.b16 %v50
    %v66 = vpack.c.b16 %v63, %v62
    %v67 = vpack.c.b16 %v65, %v64
    %vm70 = vcmask 261120
    %v72 = vsel %vm70, %v46, 0
    %74 = vmatprep.subr.bf16.mxu0 0
    %75 = vmatpush1.bf16.msra.mxu0 0
    %76 = vmatprep.subr.bf16.mxu0 0
    %77 = vmatpush1.bf16.msra.mxu0 0
    %78 = vmatprep.subr.bf16.mxu0 0
    %79 = vmatpush1.bf16.msra.mxu0 0
    %80 = vmatprep.subr.bf16.mxu0 0
    %81 = vmatpush1.bf16.msra.mxu0 0
    %82 = vmatprep.subr.bf16.mxu0 0
    %83 = vmatpush1.bf16.msra.mxu0 0
    %84 = vmatprep.subr.bf16.mxu0 0
    %85 = vmatpush1.bf16.msra.mxu0 0
    %86 = vmatprep.subr.bf16.mxu0 0
    %87 = vmatpush1.bf16.msra.mxu0 %v67
    %88 = vmatprep.subr.bf16.mxu0 0
    %89 = vmatpush1.bf16.msra.mxu0 %v66
    %90 = vmatprep.subr.bf16.mxu0 0
    %91 = vmatpush2.bf16.msra.mxu0 0
    %92 = vmatprep.subr.bf16.mxu0 0
    %93 = vmatpush2.bf16.msra.mxu0 0
    %94 = vmatprep.subr.bf16.mxu0 0
    %95 = vmatpush2.bf16.msra.mxu0 0
    %96 = vmatprep.subr.bf16.mxu0 0
    %97 = vmatpush2.bf16.msra.mxu0 0
    %98 = vmatprep.subr.bf16.mxu0 0
    %99 = vmatpush2.bf16.msra.mxu0 0
    %100 = vmatprep.subr.bf16.mxu0 0
    %101 = vmatpush2.bf16.msra.mxu0 0
    %102 = vmatprep.subr.bf16.mxu0 0
    %103 = vmatpush2.bf16.msra.mxu0 0
    %104 = vmatprep.subr.bf16.mxu0 0
    %105 = vmatpush2.bf16.msra.mxu0 0
    %106 = vmatprep.mubr.bf16.mxu0 0
    %107 = vmatmul.mubr.bf16.gmra.mxu0 %v72
    %v108 = vpop.f32.mrf.mxu0
    %v109 = vadd.f32 %v56, %v108
    %v110 = vpop.f32.mrf.mxu0
    %v111 = vpop.f32.mrf.mxu0
    %v112 = vadd.f32 %v56, %v111
    %v113 = vpop.f32.mrf.mxu0
    %114 = vdwg.mxu0
    %v115 = vpack.c.bf16 %v112, %v109
    %v117 = vunpack.c.l.b16 %v115
    %v118 = vunpack.c.h.b16 %v115
    %v119 = vpack.c.b16 %v117, %v117
    %v120 = vpack.c.b16 %v118, %v118
    %vm123 = vcmask 257024
    %124 = vst.msk [vmem:[#allocation7] sm:$0xf] %vm123, %v119
    %125 = vst.msk [vmem:[#allocation7 + $0x4] sm:$0xf] %vm123, %v120
    // Predicated region
    $region22: #{tpu_custom_call.1} parent=1 // pred_check
      _
    $region23: #{tpu_custom_call.1} parent=1 // pred_check_branch
      %127 = sbr.rel (0) target = $region25
    $region24: #{tpu_custom_call.1} parent=1 // pred_region
      %s129 = ssub.s32 128, 128
      %130 = vsyncadd [#allocation4], %s129
      %s131 = sshll.u32 [#allocation7], 4
      %s132 = int_to_ptr.vmem [resolvable:$true] %s131
      %137 = dma.vmem_to_hbm [thread:$0]  %s132, 128, %s3, [#allocation4], 64, 64, 4
    $region25: #{tpu_custom_call.1} parent=1 // pred_fallthru
      _
    // Predicated region
    $region26: #{tpu_custom_call.1} parent=1 // pred_check
      _
    $region27: #{tpu_custom_call.1} parent=1 // pred_check_branch
      %139 = sbr.rel (0) target = $region29
    $region28: #{tpu_custom_call.1} parent=1 // pred_region
      %140 = dma.done [#allocation4], 128
    $region29: #{tpu_custom_call.1} parent=1 // pred_fallthru
      _
    %141 = vsyncpa [#allocation3], 1
    %142 = vsyncpa [#allocation6], 1
    %143 = vsyncpa [#allocation4], 1

</llo_original>
